<compile_context>
chip_gen: v6e
topology: v6e:2x2x1
jax: 0.10.0
libtpu: 0.0.40
codegen_flags: <defaults>
</compile_context>

<pallas_src>
import jax
import jax.numpy as jnp
from jax.experimental import pallas as pl
from jax.experimental.pallas import tpu as pltpu

LN_EPS = 1e-5  # PyTorch nn.LayerNorm default


def projection_block_kernel(x_ref, w_ref, b_ref, alpha_ref, gamma_ref, beta_ref, o_ref):
    # Linear: y = x @ W^T + b  (W passed pre-transposed as (K, N); bf16 operands,
    # f32 accumulation on the MXU).
    y = jnp.dot(x_ref[...], w_ref[...], preferred_element_type=jnp.float32)
    y = y + b_ref[...]  # (tm, N) + (1, N)

    # PReLU, single learnable scalar (nn.PReLU() default: num_parameters=1).
    alpha = alpha_ref[0, 0]
    y = jnp.where(y >= 0, y, alpha * y)

    # LayerNorm over the last dim, biased variance, eps inside rsqrt.
    # Single reduction pass: var = E[y^2] - E[y]^2 (clamped for safety), and
    # gamma folded into the rsqrt scale.
    inv_n = 1.0 / y.shape[-1]
    mean = jnp.sum(y, axis=-1, keepdims=True) * inv_n          # (tm, 1)
    mean_sq = jnp.sum(y * y, axis=-1, keepdims=True) * inv_n   # (tm, 1)
    var = jnp.maximum(mean_sq - mean * mean, 0.0)
    scale = gamma_ref[...] * jax.lax.rsqrt(var + LN_EPS)       # (1,N)*(tm,1)->(tm,N)
    o_ref[...] = ((y - mean) * scale + beta_ref[...]).astype(o_ref.dtype)


def _round_up(a, b):
    return ((a + b - 1) // b) * b


def projection_block(x, w_t, b, alpha, gamma, beta, *, tm=None, use_bf16=True):
    """x: (B, S, K); w_t: (K, N); b/gamma/beta: (1, N); alpha: (1, 1). Returns (B, S, N)."""
    B, S, K = x.shape
    N = w_t.shape[1]
    M = B * S
    x2 = x.reshape(M, K)

    # Large row tile: biggest that fits comfortably, multiple of 8.
    if tm is None:
        tm = min(_round_up(M, 8), 512)
    tm = min(tm, _round_up(M, 8))
    tm = _round_up(tm, 8)

    # Pad M up to a multiple of tm (ragged tail handled by wrapper padding).
    Mp = pl.cdiv(M, tm) * tm
    if Mp != M:
        x2 = jnp.pad(x2, ((0, Mp - M), (0, 0)))

    # bf16 operands for the MXU; accumulation & LN stay f32 inside the kernel.
    op_dtype = jnp.bfloat16 if use_bf16 else x.dtype
    x2c = x2.astype(op_dtype)
    w_c = w_t.astype(op_dtype)
    elt = jnp.dtype(op_dtype).itemsize

    # VMEM budget: double-buffered x tile + resident (double-buffered) weight +
    # double-buffered f32 output tile + LN params + headroom. Clamp to 64 MiB (v7x).
    vmem_bytes = (
        2 * tm * K * elt
        + 2 * K * N * elt
        + 2 * tm * N * 4
        + 3 * 2 * N * 4
        + (4 << 20)
    )
    vmem_bytes = int(min(max(vmem_bytes, 16 << 20), 64 << 20))

    grid = (Mp // tm,)

    out = pl.pallas_call(
        projection_block_kernel,
        out_shape=jax.ShapeDtypeStruct((Mp, N), x.dtype),
        grid_spec=pl.GridSpec(
            grid=grid,
            in_specs=[
                pl.BlockSpec((tm, K), lambda i: (i, 0)),             # x rows tile
                pl.BlockSpec((K, N), lambda i: (0, 0)),              # weight (resident; tile K/N for very large weights on v7x)
                pl.BlockSpec((1, N), lambda i: (0, 0)),              # bias
                pl.BlockSpec(memory_space=pltpu.MemorySpace.SMEM),   # PReLU alpha scalar
                pl.BlockSpec((1, N), lambda i: (0, 0)),              # LN gamma
                pl.BlockSpec((1, N), lambda i: (0, 0)),              # LN beta
            ],
            out_specs=pl.BlockSpec((tm, N), lambda i: (i, 0)),
        ),
        compiler_params=pltpu.CompilerParams(
            dimension_semantics=("parallel",),
            vmem_limit_bytes=vmem_bytes,
        ),
    )(x2c, w_c, b, alpha, gamma, beta)

    if Mp != M:
        out = out[:M]
    return out.reshape(B, S, N)


def reference(x, w_t, b, alpha, gamma, beta, *, use_bf16=True):
    # Same operand quantization as the kernel (bf16 matmul operands, f32 accum),
    # but two-pass LayerNorm statistics.
    dt = jnp.bfloat16 if use_bf16 else x.dtype
    y = jnp.einsum(
        "bsk,kn->bsn", x.astype(dt), w_t.astype(dt),
        preferred_element_type=jnp.float32,
    ) + b[0]
    a = alpha[0, 0]
    y = jnp.where(y >= 0, y, a * y)
    mean = jnp.mean(y, axis=-1, keepdims=True)
    var = jnp.mean((y - mean) ** 2, axis=-1, keepdims=True)
    return (y - mean) / jnp.sqrt(var + LN_EPS) * gamma[0] + beta[0]


if __name__ == "__main__":
    # Small demo shapes consistent with the module: ProjectionBlock(512, 512)
    # applied to a [batch, seq, 512] activation.
    batch, seq, in_features, out_features = 2, 8, 512, 512

    key = jax.random.PRNGKey(0)
    kx, kw, kb = jax.random.split(key, 3)

    x = jax.random.normal(kx, (batch, seq, in_features), dtype=jnp.float32)

    # Deterministic synthetic parameters (shapes match the PyTorch module's __init__).
    bound = 1.0 / (in_features ** 0.5)
    w = jax.random.uniform(kw, (out_features, in_features), jnp.float32, -bound, bound)
    w_t = w.T                                                  # (K, N) for the kernel
    b = jax.random.uniform(kb, (1, out_features), jnp.float32, -bound, bound)
    alpha = jnp.full((1, 1), 0.25, dtype=jnp.float32)          # nn.PReLU() default init
    gamma = jnp.ones((1, out_features), dtype=jnp.float32)     # nn.LayerNorm weight
    beta = jnp.zeros((1, out_features), dtype=jnp.float32)     # nn.LayerNorm bias

    out = projection_block(x, w_t, b, alpha, gamma, beta)
    out = jax.block_until_ready(out)

    ref = reference(x, w_t, b, alpha, gamma, beta)
    assert out.shape == (batch, seq, out_features)
    assert jnp.allclose(out, ref, atol=1e-3, rtol=1e-3), float(jnp.max(jnp.abs(out - ref)))

    print("KERNEL_OK")
</pallas_src>

<mosaic_0001>
module attributes {stable_mosaic.version = 11 : i64} {
  func.func @projection_block_kernel(%arg0: i32, %arg1: memref<16x512xbf16, #tpu.memory_space<vmem>>, %arg2: memref<512x512xbf16, #tpu.memory_space<vmem>>, %arg3: memref<1x512xf32, #tpu.memory_space<vmem>>, %arg4: memref<1x1xf32, #tpu.memory_space<smem>>, %arg5: memref<1x512xf32, #tpu.memory_space<vmem>>, %arg6: memref<1x512xf32, #tpu.memory_space<vmem>>, %arg7: memref<16x512xf32, #tpu.memory_space<vmem>>) attributes {dimension_semantics = [#tpu.dimension_semantics<parallel>], iteration_bounds = array<i64: 1>, scalar_prefetch = 0 : i64, scratch_operands = 0 : i64, tpu.core_type = #tpu.core_type<tc>, window_params = [{transform_indices = @transform_0, window_bounds = array<i64: 16, 512>}, {pipeline_mode = #tpu.pipeline_mode<synchronous>, transform_indices = @transform_1, window_bounds = array<i64: 512, 512>}, {pipeline_mode = #tpu.pipeline_mode<synchronous>, transform_indices = @transform_2, window_bounds = array<i64: 1, 512>}, {transform_indices = @transform_3, window_bounds = array<i64: 1, 1>}, {pipeline_mode = #tpu.pipeline_mode<synchronous>, transform_indices = @transform_4, window_bounds = array<i64: 1, 512>}, {pipeline_mode = #tpu.pipeline_mode<synchronous>, transform_indices = @transform_5, window_bounds = array<i64: 1, 512>}, {transform_indices = @transform_6, window_bounds = array<i64: 16, 512>}]} {
    %c0 = arith.constant 0 : index
    %c0_0 = arith.constant 0 : index
    %0 = vector.load %arg1[%c0, %c0_0] : memref<16x512xbf16, #tpu.memory_space<vmem>>, vector<16x512xbf16>
    %c0_1 = arith.constant 0 : index
    %c0_2 = arith.constant 0 : index
    %1 = vector.load %arg2[%c0_1, %c0_2] : memref<512x512xbf16, #tpu.memory_space<vmem>>, vector<512x512xbf16>
    %cst = arith.constant dense<0.000000e+00> : vector<16x512xf32>
    %2 = tpu.matmul %0, %1, %cst {dimension_numbers = #tpu.dot_dimension_numbers<[1], [0], [0], [1], [0, 0, 1, 1], [], []>} : vector<16x512xbf16>, vector<512x512xbf16>, vector<16x512xf32> -> vector<16x512xf32>
    %c0_3 = arith.constant 0 : index
    %c0_4 = arith.constant 0 : index
    %3 = vector.load %arg3[%c0_3, %c0_4] : memref<1x512xf32, #tpu.memory_space<vmem>>, vector<1x512xf32>
    %4 = vector.broadcast %3 : vector<1x512xf32> to vector<16x512xf32>
    %5 = arith.addf %2, %4 : vector<16x512xf32>
    %c0_5 = arith.constant 0 : index
    %c0_6 = arith.constant 0 : index
    %6 = memref.load %arg4[%c0_5, %c0_6] : memref<1x1xf32, #tpu.memory_space<smem>>
    %cst_7 = arith.constant 0.000000e+00 : f32
    %7 = vector.broadcast %cst_7 : f32 to vector<16x512xf32>
    %8 = arith.cmpf oge, %5, %7 : vector<16x512xf32>
    %9 = vector.broadcast %6 : f32 to vector<16x512xf32>
    %10 = arith.mulf %9, %5 : vector<16x512xf32>
    %11 = arith.select %8, %5, %10 : vector<16x512xi1>, vector<16x512xf32>
    %cst_8 = arith.constant dense<0.000000e+00> : vector<16xf32>
    %12 = vector.multi_reduction <add>, %11, %cst_8 [1] : vector<16x512xf32> to vector<16xf32>
    %13 = vector.shape_cast %12 : vector<16xf32> to vector<16x1xf32>
    %cst_9 = arith.constant 0.001953125 : f32
    %14 = vector.broadcast %cst_9 : f32 to vector<16x1xf32>
    %15 = arith.mulf %13, %14 : vector<16x1xf32>
    %16 = arith.mulf %11, %11 : vector<16x512xf32>
    %cst_10 = arith.constant dense<0.000000e+00> : vector<16xf32>
    %17 = vector.multi_reduction <add>, %16, %cst_10 [1] : vector<16x512xf32> to vector<16xf32>
    %18 = vector.shape_cast %17 : vector<16xf32> to vector<16x1xf32>
    %cst_11 = arith.constant 0.001953125 : f32
    %19 = vector.broadcast %cst_11 : f32 to vector<16x1xf32>
    %20 = arith.mulf %18, %19 : vector<16x1xf32>
    %21 = arith.mulf %15, %15 : vector<16x1xf32>
    %22 = arith.subf %20, %21 : vector<16x1xf32>
    %cst_12 = arith.constant 0.000000e+00 : f32
    %23 = vector.broadcast %cst_12 : f32 to vector<16x1xf32>
    %24 = arith.maximumf %22, %23 : vector<16x1xf32>
    %c0_13 = arith.constant 0 : index
    %c0_14 = arith.constant 0 : index
    %25 = vector.load %arg5[%c0_13, %c0_14] : memref<1x512xf32, #tpu.memory_space<vmem>>, vector<1x512xf32>
    %cst_15 = arith.constant 9.99999974E-6 : f32
    %26 = vector.broadcast %cst_15 : f32 to vector<16x1xf32>
    %27 = arith.addf %24, %26 : vector<16x1xf32>
    %28 = math.rsqrt %27 : vector<16x1xf32>
    %29 = vector.broadcast %25 : vector<1x512xf32> to vector<16x512xf32>
    %30 = vector.broadcast %28 : vector<16x1xf32> to vector<16x512xf32>
    %31 = arith.mulf %29, %30 : vector<16x512xf32>
    %32 = vector.broadcast %15 : vector<16x1xf32> to vector<16x512xf32>
    %33 = arith.subf %11, %32 : vector<16x512xf32>
    %34 = arith.mulf %33, %31 : vector<16x512xf32>
    %c0_16 = arith.constant 0 : index
    %c0_17 = arith.constant 0 : index
    %35 = vector.load %arg6[%c0_16, %c0_17] : memref<1x512xf32, #tpu.memory_space<vmem>>, vector<1x512xf32>
    %36 = vector.broadcast %35 : vector<1x512xf32> to vector<16x512xf32>
    %37 = arith.addf %34, %36 : vector<16x512xf32>
    %c0_18 = arith.constant 0 : index
    %c0_19 = arith.constant 0 : index
    %38 = vector.load %arg7[%c0_18, %c0_19] : memref<16x512xf32, #tpu.memory_space<vmem>>, vector<16x512xf32>
    tpu.vector_store %arg7[%c0_18, %c0_19], %37 {strides = array<i32>} : memref<16x512xf32, #tpu.memory_space<vmem>>, vector<16x512xf32>,
    return
  }
  func.func @transform_0(%arg0: i32) -> (i32, i32) {
    %c0_i32 = arith.constant 0 : i32
    %c0_i32_0 = arith.constant 0 : i32
    return %arg0, %c0_i32 : i32, i32
  }
  func.func @transform_1(%arg0: i32) -> (i32, i32) {
    %c0_i32 = arith.constant 0 : i32
    %c0_i32_0 = arith.constant 0 : i32
    %c0_i32_1 = arith.constant 0 : i32
    return %c0_i32, %c0_i32_0 : i32, i32
  }
  func.func @transform_2(%arg0: i32) -> (i32, i32) {
    %c0_i32 = arith.constant 0 : i32
    %c0_i32_0 = arith.constant 0 : i32
    %c0_i32_1 = arith.constant 0 : i32
    return %c0_i32, %c0_i32_0 : i32, i32
  }
  func.func @transform_3(%arg0: i32) -> (i32, i32) {
    %c0_i32 = arith.constant 0 : i32
    %c0_i32_0 = arith.constant 0 : i32
    %c0_i32_1 = arith.constant 0 : i32
    return %c0_i32, %c0_i32_0 : i32, i32
  }
  func.func @transform_4(%arg0: i32) -> (i32, i32) {
    %c0_i32 = arith.constant 0 : i32
    %c0_i32_0 = arith.constant 0 : i32
    %c0_i32_1 = arith.constant 0 : i32
    return %c0_i32, %c0_i32_0 : i32, i32
  }
  func.func @transform_5(%arg0: i32) -> (i32, i32) {
    %c0_i32 = arith.constant 0 : i32
    %c0_i32_0 = arith.constant 0 : i32
    %c0_i32_1 = arith.constant 0 : i32
    return %c0_i32, %c0_i32_0 : i32, i32
  }
  func.func @transform_6(%arg0: i32) -> (i32, i32) {
    %c0_i32 = arith.constant 0 : i32
    %c0_i32_0 = arith.constant 0 : i32
    return %arg0, %c0_i32 : i32, i32
  }
}

</mosaic_0001>

<llo_original>
// kernel: tpu_custom_call.1
$region0: #{tpu_custom_call.1}
  #allocation0 [shape = 'u32[]', space=smem, size = 0x4, offset = 0x4, fixed_abs, tag = 'smem constant byte address 0x4 - core index']
  #allocation1 [shape = 'u32[144,128]{1,0:T(1,128)}', space=vmem, size = 0x12000, scoped, tag = 'internal scratch']
  #allocation2 [shape = 'f32[1,1]{1,0:T(1,128)S(6)}', space=smem, size = 0x200, scoped, tag = 'scoped memory for tpu_custom_call.1']
  %s0 = inlined_call_operand.hbm [shape: bf16[16,512], index: 0, kind: input, shape index: {}]
  %s1 = inlined_call_operand.hbm [shape: bf16[512,512], index: 1, kind: input, shape index: {}]
  %s2 = inlined_call_operand.vmem [shape: f32[1,512], index: 2, kind: input, shape index: {}]
  %s3 = inlined_call_operand.<no memory space> [shape: f32[1,1], index: 3, kind: input, shape index: {}]
  %s4 = inlined_call_operand.hbm [shape: f32[1,512], index: 4, kind: input, shape index: {}]
  %s5 = inlined_call_operand.vmem [shape: f32[1,512], index: 5, kind: input, shape index: {}]
  %s6 = inlined_call_operand.hbm [shape: f32[16,512], index: 6, kind: output, shape index: {}]
  %s7 = sld [smem:[#allocation0]]
  $region46: #{tpu_custom_call.1} parent=0
    _
  %s9 = ssub.s32 1, %s7
  %s10 = scalar_select 0, %s9, %s7
  %11 = sst [smem:[#allocation2]] %s3
  $region1: #{tpu_custom_call.1} parent=0
    #allocation3 [shape = 'u8[16384]{0}', space=vmem, size = 0x4000, scoped, tag = 'input window, operand 0, single buffered']
    #allocation4 [shape = 's32[1]{0}', space=sflag, size = 0x4, scoped, tag = 'scoped memory for tpu_custom_call.1']
    #allocation5 [shape = 's32[1]{0}', space=sflag, size = 0x4, scoped, tag = 'scoped memory for tpu_custom_call.1']
    #allocation6 [shape = 'u8[524288]{0}', space=vmem, size = 0x80000, scoped, tag = 'input window, operand 1, single buffered']
    #allocation7 [shape = 's32[1]{0}', space=sflag, size = 0x4, scoped, tag = 'scoped memory for tpu_custom_call.1']
    #allocation8 [shape = 'u8[2048]{0}', space=vmem, size = 0x800, scoped, tag = 'input window, operand 4, single buffered']
    #allocation9 [shape = 'u8[32768]{0}', space=vmem, size = 0x8000, scoped, tag = 'output window, operand 0, single buffered']
    %12 = vsyncpa [#allocation4], 0
    %13 = vsyncpa [#allocation7], 0
    %14 = vsyncpa [#allocation5], 0
    // Predicated region
    $region2: #{tpu_custom_call.1} parent=1 // pred_check
      _
    $region3: #{tpu_custom_call.1} parent=1 // pred_check_branch
      %16 = sbr.rel (0) target = $region5
    $region4: #{tpu_custom_call.1} parent=1 // pred_region
      %s18 = ssub.s32 512, 512
      %19 = vsyncadd [#allocation4], %s18
      %s20 = sshll.u32 [#allocation3], 4
      %s21 = int_to_ptr.vmem [resolvable:$true] %s20
      %26 = dma.hbm_to_vmem [thread:$0]  %s0, 512, %s21, [#allocation4], 256, 256, 16
    $region5: #{tpu_custom_call.1} parent=1 // pred_fallthru
      _
    // Predicated region
    $region6: #{tpu_custom_call.1} parent=1 // pred_check
      _
    $region7: #{tpu_custom_call.1} parent=1 // pred_check_branch
      %28 = sbr.rel (0) target = $region9
    $region8: #{tpu_custom_call.1} parent=1 // pred_region
      %s30 = ssub.s32 16384, 16384
      %31 = vsyncadd [#allocation7], %s30
      %s32 = sshll.u32 [#allocation6], 4
      %s33 = int_to_ptr.vmem [resolvable:$true] %s32
      %38 = dma.hbm_to_vmem [thread:$0]  %s1, 16384, %s33, [#allocation7], 256, 256, 16
    $region9: #{tpu_custom_call.1} parent=1 // pred_fallthru
      _
    // Predicated region
    $region10: #{tpu_custom_call.1} parent=1 // pred_check
      _
    $region11: #{tpu_custom_call.1} parent=1 // pred_check_branch
      %40 = sbr.rel (0) target = $region13
    $region12: #{tpu_custom_call.1} parent=1 // pred_region
      _
    $region13: #{tpu_custom_call.1} parent=1 // pred_fallthru
      _
    // Predicated region
    $region14: #{tpu_custom_call.1} parent=1 // pred_check
      _
    $region15: #{tpu_custom_call.1} parent=1 // pred_check_branch
      %42 = sbr.rel (0) target = $region17
    $region16: #{tpu_custom_call.1} parent=1 // pred_region
      _
    $region17: #{tpu_custom_call.1} parent=1 // pred_fallthru
      _
    // Predicated region
    $region18: #{tpu_custom_call.1} parent=1 // pred_check
      _
    $region19: #{tpu_custom_call.1} parent=1 // pred_check_branch
      %44 = sbr.rel (0) target = $region21
    $region20: #{tpu_custom_call.1} parent=1 // pred_region
      %s46 = ssub.s32 64, 64
      %47 = vsyncadd [#allocation7], %s46
      %s49 = sshll.u32 [#allocation8], 4
      %s50 = int_to_ptr.vmem [resolvable:$true] %s49
      %52 = dma.hbm_to_vmem [thread:$0]  %s4, 64, %s50, [#allocation7]
    $region21: #{tpu_custom_call.1} parent=1 // pred_fallthru
      _
    // Predicated region
    $region22: #{tpu_custom_call.1} parent=1 // pred_check
      _
    $region23: #{tpu_custom_call.1} parent=1 // pred_check_branch
      %54 = sbr.rel (0) target = $region25
    $region24: #{tpu_custom_call.1} parent=1 // pred_region
      _
    $region25: #{tpu_custom_call.1} parent=1 // pred_fallthru
      _
    // Predicated region
    $region26: #{tpu_custom_call.1} parent=1 // pred_check
      _
    $region27: #{tpu_custom_call.1} parent=1 // pred_check_branch
      %56 = sbr.rel (0) target = $region29
    $region28: #{tpu_custom_call.1} parent=1 // pred_region
      %57 = dma.done [#allocation4], 512
    $region29: #{tpu_custom_call.1} parent=1 // pred_fallthru
      _
    // Predicated region
    $region30: #{tpu_custom_call.1} parent=1 // pred_check
      _
    $region31: #{tpu_custom_call.1} parent=1 // pred_check_branch
      %59 = sbr.rel (0) target = $region33
    $region32: #{tpu_custom_call.1} parent=1 // pred_region
      %60 = dma.done [#allocation7], 16384
    $region33: #{tpu_custom_call.1} parent=1 // pred_fallthru
      _
    // Predicated region
    $region34: #{tpu_custom_call.1} parent=1 // pred_check
      _
    $region35: #{tpu_custom_call.1} parent=1 // pred_check_branch
      %62 = sbr.rel (0) target = $region37
    $region36: #{tpu_custom_call.1} parent=1 // pred_region
      %63 = dma.done [#allocation7], 64
    $region37: #{tpu_custom_call.1} parent=1 // pred_fallthru
      _
    %v64 = vld [vmem:[#allocation3] sm:$0xff]
    %v65 = vld [vmem:[#allocation3 + $0x8] sm:$0xff]
    %v66 = vld [vmem:[#allocation3 + $0x10] sm:$0xff]
    %v67 = vld [vmem:[#allocation3 + $0x18] sm:$0xff]
    %v68 = vld [vmem:[#allocation6] sm:$0xff]
    %v69 = vld [vmem:[#allocation6 + $0x8] sm:$0xff]
    %v70 = vld [vmem:[#allocation6 + $0x10] sm:$0xff]
    %v71 = vld [vmem:[#allocation6 + $0x18] sm:$0xff]
    %v72 = vld [vmem:[#allocation6 + $0x20] sm:$0xff]
    %v73 = vld [vmem:[#allocation6 + $0x28] sm:$0xff]
    %v74 = vld [vmem:[#allocation6 + $0x30] sm:$0xff]
    %v75 = vld [vmem:[#allocation6 + $0x38] sm:$0xff]
    %v76 = vld [vmem:[#allocation6 + $0x40] sm:$0xff]
    %v77 = vld [vmem:[#allocation6 + $0x48] sm:$0xff]
    %v78 = vld [vmem:[#allocation6 + $0x50] sm:$0xff]
    %v79 = vld [vmem:[#allocation6 + $0x58] sm:$0xff]
    %v80 = vld [vmem:[#allocation6 + $0x60] sm:$0xff]
    %v81 = vld [vmem:[#allocation6 + $0x68] sm:$0xff]
    %v82 = vld [vmem:[#allocation6 + $0x70] sm:$0xff]
    %v83 = vld [vmem:[#allocation6 + $0x78] sm:$0xff]
    %v84 = vld [vmem:[#allocation6 + $0x80] sm:$0xff]
    %v85 = vld [vmem:[#allocation6 + $0x88] sm:$0xff]
    %v86 = vld [vmem:[#allocation6 + $0x90] sm:$0xff]
    %v87 = vld [vmem:[#allocation6 + $0x98] sm:$0xff]
    %v88 = vld [vmem:[#allocation6 + $0xa0] sm:$0xff]
    %v89 = vld [vmem:[#allocation6 + $0xa8] sm:$0xff]
    %v90 = vld [vmem:[#allocation6 + $0xb0] sm:$0xff]
    %v91 = vld [vmem:[#allocation6 + $0xb8] sm:$0xff]
    %v92 = vld [vmem:[#allocation6 + $0xc0] sm:$0xff]
    %v93 = vld [vmem:[#allocation6 + $0xc8] sm:$0xff]
    %v94 = vld [vmem:[#allocation6 + $0xd0] sm:$0xff]
    %v95 = vld [vmem:[#allocation6 + $0xd8] sm:$0xff]
    %v96 = vld [vmem:[#allocation6 + $0xe0] sm:$0xff]
    %v97 = vld [vmem:[#allocation6 + $0xe8] sm:$0xff]
    %v98 = vld [vmem:[#allocation6 + $0xf0] sm:$0xff]
    %v99 = vld [vmem:[#allocation6 + $0xf8] sm:$0xff]
    %v100 = vld [vmem:[#allocation6 + $0x100] sm:$0xff]
    %v101 = vld [vmem:[#allocation6 + $0x108] sm:$0xff]
    %v102 = vld [vmem:[#allocation6 + $0x110] sm:$0xff]
    %v103 = vld [vmem:[#allocation6 + $0x118] sm:$0xff]
    %v104 = vld [vmem:[#allocation6 + $0x120] sm:$0xff]
    %v105 = vld [vmem:[#allocation6 + $0x128] sm:$0xff]
    %v106 = vld [vmem:[#allocation6 + $0x130] sm:$0xff]
    %v107 = vld [vmem:[#allocation6 + $0x138] sm:$0xff]
    %v108 = vld [vmem:[#allocation6 + $0x140] sm:$0xff]
    %v109 = vld [vmem:[#allocation6 + $0x148] sm:$0xff]
    %v110 = vld [vmem:[#allocation6 + $0x150] sm:$0xff]
    %v111 = vld [vmem:[#allocation6 + $0x158] sm:$0xff]
    %v112 = vld [vmem:[#allocation6 + $0x160] sm:$0xff]
    %v113 = vld [vmem:[#allocation6 + $0x168] sm:$0xff]
    %v114 = vld [vmem:[#allocation6 + $0x170] sm:$0xff]
    %v115 = vld [vmem:[#allocation6 + $0x178] sm:$0xff]
    %v116 = vld [vmem:[#allocation6 + $0x180] sm:$0xff]
    %v117 = vld [vmem:[#allocation6 + $0x188] sm:$0xff]
    %v118 = vld [vmem:[#allocation6 + $0x190] sm:$0xff]
    %v119 = vld [vmem:[#allocation6 + $0x198] sm:$0xff]
    %v120 = vld [vmem:[#allocation6 + $0x1a0] sm:$0xff]
    %v121 = vld [vmem:[#allocation6 + $0x1a8] sm:$0xff]
    %v122 = vld [vmem:[#allocation6 + $0x1b0] sm:$0xff]
    %v123 = vld [vmem:[#allocation6 + $0x1b8] sm:$0xff]
    %v124 = vld [vmem:[#allocation6 + $0x1c0] sm:$0xff]
    %v125 = vld [vmem:[#allocation6 + $0x1c8] sm:$0xff]
    %v126 = vld [vmem:[#allocation6 + $0x1d0] sm:$0xff]
    %v127 = vld [vmem:[#allocation6 + $0x1d8] sm:$0xff]
    %v128 = vld [vmem:[#allocation6 + $0x1e0] sm:$0xff]
    %v129 = vld [vmem:[#allocation6 + $0x1e8] sm:$0xff]
    %v130 = vld [vmem:[#allocation6 + $0x1f0] sm:$0xff]
    %v131 = vld [vmem:[#allocation6 + $0x1f8] sm:$0xff]
    %v132 = vld [vmem:[#allocation6 + $0x200] sm:$0xff]
    %v133 = vld [vmem:[#allocation6 + $0x208] sm:$0xff]
    %v134 = vld [vmem:[#allocation6 + $0x210] sm:$0xff]
    %v135 = vld [vmem:[#allocation6 + $0x218] sm:$0xff]
    %v136 = vld [vmem:[#allocation6 + $0x220] sm:$0xff]
    %v137 = vld [vmem:[#allocation6 + $0x228] sm:$0xff]
    %v138 = vld [vmem:[#allocation6 + $0x230] sm:$0xff]
    %v139 = vld [vmem:[#allocation6 + $0x238] sm:$0xff]
    %v140 = vld [vmem:[#allocation6 + $0x240] sm:$0xff]
    %v141 = vld [vmem:[#allocation6 + $0x248] sm:$0xff]
    %v142 = vld [vmem:[#allocation6 + $0x250] sm:$0xff]
    %v143 = vld [vmem:[#allocation6 + $0x258] sm:$0xff]
    %v144 = vld [vmem:[#allocation6 + $0x260] sm:$0xff]
    %v145 = vld [vmem:[#allocation6 + $0x268] sm:$0xff]
    %v146 = vld [vmem:[#allocation6 + $0x270] sm:$0xff]
    %v147 = vld [vmem:[#allocation6 + $0x278] sm:$0xff]
    %v148 = vld [vmem:[#allocation6 + $0x280] sm:$0xff]
    %v149 = vld [vmem:[#allocation6 + $0x288] sm:$0xff]
    %v150 = vld [vmem:[#allocation6 + $0x290] sm:$0xff]
    %v151 = vld [vmem:[#allocation6 + $0x298] sm:$0xff]
    %v152 = vld [vmem:[#allocation6 + $0x2a0] sm:$0xff]
    %v153 = vld [vmem:[#allocation6 + $0x2a8] sm:$0xff]
    %v154 = vld [vmem:[#allocation6 + $0x2b0] sm:$0xff]
    %v155 = vld [vmem:[#allocation6 + $0x2b8] sm:$0xff]
    %v156 = vld [vmem:[#allocation6 + $0x2c0] sm:$0xff]
    %v157 = vld [vmem:[#allocation6 + $0x2c8] sm:$0xff]
    %v158 = vld [vmem:[#allocation6 + $0x2d0] sm:$0xff]
    %v159 = vld [vmem:[#allocation6 + $0x2d8] sm:$0xff]
    %v160 = vld [vmem:[#allocation6 + $0x2e0] sm:$0xff]
    %v161 = vld [vmem:[#allocation6 + $0x2e8] sm:$0xff]
    %v162 = vld [vmem:[#allocation6 + $0x2f0] sm:$0xff]
    %v163 = vld [vmem:[#allocation6 + $0x2f8] sm:$0xff]
    %v164 = vld [vmem:[#allocation6 + $0x300] sm:$0xff]
    %v165 = vld [vmem:[#allocation6 + $0x308] sm:$0xff]
    %v166 = vld [vmem:[#allocation6 + $0x310] sm:$0xff]
    %v167 = vld [vmem:[#allocation6 + $0x318] sm:$0xff]
    %v168 = vld [vmem:[#allocation6 + $0x320] sm:$0xff]
    %v169 = vld [vmem:[#allocation6 + $0x328] sm:$0xff]
    %v170 = vld [vmem:[#allocation6 + $0x330] sm:$0xff]
    %v171 = vld [vmem:[#allocation6 + $0x338] sm:$0xff]
    %v172 = vld [vmem:[#allocation6 + $0x340] sm:$0xff]
    %v173 = vld [vmem:[#allocation6 + $0x348] sm:$0xff]
    %v174 = vld [vmem:[#allocation6 + $0x350] sm:$0xff]
    %v175 = vld [vmem:[#allocation6 + $0x358] sm:$0xff]
    %v176 = vld [vmem:[#allocation6 + $0x360] sm:$0xff]
    %v177 = vld [vmem:[#allocation6 + $0x368] sm:$0xff]
    %v178 = vld [vmem:[#allocation6 + $0x370] sm:$0xff]
    %v179 = vld [vmem:[#allocation6 + $0x378] sm:$0xff]
    %v180 = vld [vmem:[#allocation6 + $0x380] sm:$0xff]
    %v181 = vld [vmem:[#allocation6 + $0x388] sm:$0xff]
    %v182 = vld [vmem:[#allocation6 + $0x390] sm:$0xff]
    %v183 = vld [vmem:[#allocation6 + $0x398] sm:$0xff]
    %v184 = vld [vmem:[#allocation6 + $0x3a0] sm:$0xff]
    %v185 = vld [vmem:[#allocation6 + $0x3a8] sm:$0xff]
    %v186 = vld [vmem:[#allocation6 + $0x3b0] sm:$0xff]
    %v187 = vld [vmem:[#allocation6 + $0x3b8] sm:$0xff]
    %v188 = vld [vmem:[#allocation6 + $0x3c0] sm:$0xff]
    %v189 = vld [vmem:[#allocation6 + $0x3c8] sm:$0xff]
    %v190 = vld [vmem:[#allocation6 + $0x3d0] sm:$0xff]
    %v191 = vld [vmem:[#allocation6 + $0x3d8] sm:$0xff]
    %v192 = vld [vmem:[#allocation6 + $0x3e0] sm:$0xff]
    %v193 = vld [vmem:[#allocation6 + $0x3e8] sm:$0xff]
    %v194 = vld [vmem:[#allocation6 + $0x3f0] sm:$0xff]
    %v195 = vld [vmem:[#allocation6 + $0x3f8] sm:$0xff]
    %v196 = vld [vmem:[%s2] sm:$0xf]
    %v198 = vlaneseq
    %v199 = vshrl.u32 %v198, 7
    %v200 = vsub.s32 0, %v199
    %v201 = vrot.slane %v196, %v200
    %v202 = vlaneseq
    %v203 = vshrl.u32 %v202, 7
    %v204 = vsub.s32 1, %v203
    %v205 = vrot.slane %v196, %v204
    %v206 = vlaneseq
    %v207 = vshrl.u32 %v206, 7
    %v208 = vsub.s32 2, %v207
    %v209 = vrot.slane %v196, %v208
    %v210 = vlaneseq
    %v211 = vshrl.u32 %v210, 7
    %v212 = vsub.s32 3, %v211
    %v213 = vrot.slane %v196, %v212
    %v222 = vunpack.c.l.b16 %v64
    %v223 = vunpack.c.h.b16 %v64
    %v224 = vunpack.c.l.b16 %v65
    %v225 = vunpack.c.h.b16 %v65
    %v226 = vunpack.c.l.b16 %v66
    %v227 = vunpack.c.h.b16 %v66
    %v228 = vunpack.c.l.b16 %v67
    %v229 = vunpack.c.h.b16 %v67
    %v230 = vpack.c.b16 %v226, %v222
    %v231 = vpack.c.b16 %v227, %v223
    %v232 = vpack.c.b16 %v228, %v224
    %v233 = vpack.c.b16 %v229, %v225
    %v366 = vunpack.c.l.b16 %v68
    %v367 = vunpack.c.h.b16 %v68
    %v368 = vunpack.c.l.b16 %v69
    %v369 = vunpack.c.h.b16 %v69
    %v370 = vunpack.c.l.b16 %v70
    %v371 = vunpack.c.h.b16 %v70
    %v372 = vunpack.c.l.b16 %v71
    %v373 = vunpack.c.h.b16 %v71
    %v374 = vunpack.c.l.b16 %v72
    %v375 = vunpack.c.h.b16 %v72
    %v376 = vunpack.c.l.b16 %v73
    %v377 = vunpack.c.h.b16 %v73
    %v378 = vunpack.c.l.b16 %v74
    %v379 = vunpack.c.h.b16 %v74
    %v380 = vunpack.c.l.b16 %v75
    %v381 = vunpack.c.h.b16 %v75
    %v382 = vunpack.c.l.b16 %v76
    %v383 = vunpack.c.h.b16 %v76
    %v384 = vunpack.c.l.b16 %v77
    %v385 = vunpack.c.h.b16 %v77
    %v386 = vunpack.c.l.b16 %v78
    %v387 = vunpack.c.h.b16 %v78
    %v388 = vunpack.c.l.b16 %v79
    %v389 = vunpack.c.h.b16 %v79
    %v390 = vunpack.c.l.b16 %v80
    %v391 = vunpack.c.h.b16 %v80
    %v392 = vunpack.c.l.b16 %v81
    %v393 = vunpack.c.h.b16 %v81
    %v394 = vunpack.c.l.b16 %v82
    %v395 = vunpack.c.h.b16 %v82
    %v396 = vunpack.c.l.b16 %v83
    %v397 = vunpack.c.h.b16 %v83
    %v398 = vunpack.c.l.b16 %v84
    %v399 = vunpack.c.h.b16 %v84
    %v400 = vunpack.c.l.b16 %v85
    %v401 = vunpack.c.h.b16 %v85
    %v402 = vunpack.c.l.b16 %v86
    %v403 = vunpack.c.h.b16 %v86
    %v404 = vunpack.c.l.b16 %v87
    %v405 = vunpack.c.h.b16 %v87
    %v406 = vunpack.c.l.b16 %v88
    %v407 = vunpack.c.h.b16 %v88
    %v408 = vunpack.c.l.b16 %v89
    %v409 = vunpack.c.h.b16 %v89
    %v410 = vunpack.c.l.b16 %v90
    %v411 = vunpack.c.h.b16 %v90
    %v412 = vunpack.c.l.b16 %v91
    %v413 = vunpack.c.h.b16 %v91
    %v414 = vunpack.c.l.b16 %v92
    %v415 = vunpack.c.h.b16 %v92
    %v416 = vunpack.c.l.b16 %v93
    %v417 = vunpack.c.h.b16 %v93
    %v418 = vunpack.c.l.b16 %v94
    %v419 = vunpack.c.h.b16 %v94
    %v420 = vunpack.c.l.b16 %v95
    %v421 = vunpack.c.h.b16 %v95
    %v422 = vunpack.c.l.b16 %v96
    %v423 = vunpack.c.h.b16 %v96
    %v424 = vunpack.c.l.b16 %v97
    %v425 = vunpack.c.h.b16 %v97
    %v426 = vunpack.c.l.b16 %v98
    %v427 = vunpack.c.h.b16 %v98
    %v428 = vunpack.c.l.b16 %v99
    %v429 = vunpack.c.h.b16 %v99
    %v430 = vunpack.c.l.b16 %v100
    %v431 = vunpack.c.h.b16 %v100
    %v432 = vunpack.c.l.b16 %v101
    %v433 = vunpack.c.h.b16 %v101
    %v434 = vunpack.c.l.b16 %v102
    %v435 = vunpack.c.h.b16 %v102
    %v436 = vunpack.c.l.b16 %v103
    %v437 = vunpack.c.h.b16 %v103
    %v438 = vunpack.c.l.b16 %v104
    %v439 = vunpack.c.h.b16 %v104
    %v440 = vunpack.c.l.b16 %v105
    %v441 = vunpack.c.h.b16 %v105
    %v442 = vunpack.c.l.b16 %v106
    %v443 = vunpack.c.h.b16 %v106
    %v444 = vunpack.c.l.b16 %v107
    %v445 = vunpack.c.h.b16 %v107
    %v446 = vunpack.c.l.b16 %v108
    %v447 = vunpack.c.h.b16 %v108
    %v448 = vunpack.c.l.b16 %v109
    %v449 = vunpack.c.h.b16 %v109
    %v450 = vunpack.c.l.b16 %v110
    %v451 = vunpack.c.h.b16 %v110
    %v452 = vunpack.c.l.b16 %v111
    %v453 = vunpack.c.h.b16 %v111
    %v454 = vunpack.c.l.b16 %v112
    %v455 = vunpack.c.h.b16 %v112
    %v456 = vunpack.c.l.b16 %v113
    %v457 = vunpack.c.h.b16 %v113
    %v458 = vunpack.c.l.b16 %v114
    %v459 = vunpack.c.h.b16 %v114
    %v460 = vunpack.c.l.b16 %v115
    %v461 = vunpack.c.h.b16 %v115
    %v462 = vunpack.c.l.b16 %v116
    %v463 = vunpack.c.h.b16 %v116
    %v464 = vunpack.c.l.b16 %v117
    %v465 = vunpack.c.h.b16 %v117
    %v466 = vunpack.c.l.b16 %v118
    %v467 = vunpack.c.h.b16 %v118
    %v468 = vunpack.c.l.b16 %v119
    %v469 = vunpack.c.h.b16 %v119
    %v470 = vunpack.c.l.b16 %v120
    %v471 = vunpack.c.h.b16 %v120
    %v472 = vunpack.c.l.b16 %v121
    %v473 = vunpack.c.h.b16 %v121
    %v474 = vunpack.c.l.b16 %v122
    %v475 = vunpack.c.h.b16 %v122
    %v476 = vunpack.c.l.b16 %v123
    %v477 = vunpack.c.h.b16 %v123
    %v478 = vunpack.c.l.b16 %v124
    %v479 = vunpack.c.h.b16 %v124
    %v480 = vunpack.c.l.b16 %v125
    %v481 = vunpack.c.h.b16 %v125
    %v482 = vunpack.c.l.b16 %v126
    %v483 = vunpack.c.h.b16 %v126
    %v484 = vunpack.c.l.b16 %v127
    %v485 = vunpack.c.h.b16 %v127
    %v486 = vunpack.c.l.b16 %v128
    %v487 = vunpack.c.h.b16 %v128
    %v488 = vunpack.c.l.b16 %v129
    %v489 = vunpack.c.h.b16 %v129
    %v490 = vunpack.c.l.b16 %v130
    %v491 = vunpack.c.h.b16 %v130
    %v492 = vunpack.c.l.b16 %v131
    %v493 = vunpack.c.h.b16 %v131
    %v494 = vunpack.c.l.b16 %v132
    %v495 = vunpack.c.h.b16 %v132
    %v496 = vunpack.c.l.b16 %v133
    %v497 = vunpack.c.h.b16 %v133
    %v498 = vunpack.c.l.b16 %v134
    %v499 = vunpack.c.h.b16 %v134
    %v500 = vunpack.c.l.b16 %v135
    %v501 = vunpack.c.h.b16 %v135
    %v502 = vunpack.c.l.b16 %v136
    %v503 = vunpack.c.h.b16 %v136
    %v504 = vunpack.c.l.b16 %v137
    %v505 = vunpack.c.h.b16 %v137
    %v506 = vunpack.c.l.b16 %v138
    %v507 = vunpack.c.h.b16 %v138
    %v508 = vunpack.c.l.b16 %v139
    %v509 = vunpack.c.h.b16 %v139
    %v510 = vunpack.c.l.b16 %v140
    %v511 = vunpack.c.h.b16 %v140
    %v512 = vunpack.c.l.b16 %v141
    %v513 = vunpack.c.h.b16 %v141
    %v514 = vunpack.c.l.b16 %v142
    %v515 = vunpack.c.h.b16 %v142
    %v516 = vunpack.c.l.b16 %v143
    %v517 = vunpack.c.h.b16 %v143
    %v518 = vunpack.c.l.b16 %v144
    %v519 = vunpack.c.h.b16 %v144
    %v520 = vunpack.c.l.b16 %v145
    %v521 = vunpack.c.h.b16 %v145
    %v522 = vunpack.c.l.b16 %v146
    %v523 = vunpack.c.h.b16 %v146
    %v524 = vunpack.c.l.b16 %v147
    %v525 = vunpack.c.h.b16 %v147
    %v526 = vunpack.c.l.b16 %v148
    %v527 = vunpack.c.h.b16 %v148
    %v528 = vunpack.c.l.b16 %v149
    %v529 = vunpack.c.h.b16 %v149
    %v530 = vunpack.c.l.b16 %v150
    %v531 = vunpack.c.h.b16 %v150
    %v532 = vunpack.c.l.b16 %v151
    %v533 = vunpack.c.h.b16 %v151
    %v534 = vunpack.c.l.b16 %v152
    %v535 = vunpack.c.h.b16 %v152
    %v536 = vunpack.c.l.b16 %v153
    %v537 = vunpack.c.h.b16 %v153
    %v538 = vunpack.c.l.b16 %v154
    %v539 = vunpack.c.h.b16 %v154
    %v540 = vunpack.c.l.b16 %v155
    %v541 = vunpack.c.h.b16 %v155
    %v542 = vunpack.c.l.b16 %v156
    %v543 = vunpack.c.h.b16 %v156
    %v544 = vunpack.c.l.b16 %v157
    %v545 = vunpack.c.h.b16 %v157
    %v546 = vunpack.c.l.b16 %v158
    %v547 = vunpack.c.h.b16 %v158
    %v548 = vunpack.c.l.b16 %v159
    %v549 = vunpack.c.h.b16 %v159
    %v550 = vunpack.c.l.b16 %v160
    %v551 = vunpack.c.h.b16 %v160
    %v552 = vunpack.c.l.b16 %v161
    %v553 = vunpack.c.h.b16 %v161
    %v554 = vunpack.c.l.b16 %v162
    %v555 = vunpack.c.h.b16 %v162
    %v556 = vunpack.c.l.b16 %v163
    %v557 = vunpack.c.h.b16 %v163
    %v558 = vunpack.c.l.b16 %v164
    %v559 = vunpack.c.h.b16 %v164
    %v560 = vunpack.c.l.b16 %v165
    %v561 = vunpack.c.h.b16 %v165
    %v562 = vunpack.c.l.b16 %v166
    %v563 = vunpack.c.h.b16 %v166
    %v564 = vunpack.c.l.b16 %v167
    %v565 = vunpack.c.h.b16 %v167
    %v566 = vunpack.c.l.b16 %v168
    %v567 = vunpack.c.h.b16 %v168
    %v568 = vunpack.c.l.b16 %v169
    %v569 = vunpack.c.h.b16 %v169
    %v570 = vunpack.c.l.b16 %v170
    %v571 = vunpack.c.h.b16 %v170
    %v572 = vunpack.c.l.b16 %v171
    %v573 = vunpack.c.h.b16 %v171
    %v574 = vunpack.c.l.b16 %v172
    %v575 = vunpack.c.h.b16 %v172
    %v576 = vunpack.c.l.b16 %v173
    %v577 = vunpack.c.h.b16 %v173
    %v578 = vunpack.c.l.b16 %v174
    %v579 = vunpack.c.h.b16 %v174
    %v580 = vunpack.c.l.b16 %v175
    %v581 = vunpack.c.h.b16 %v175
    %v582 = vunpack.c.l.b16 %v176
    %v583 = vunpack.c.h.b16 %v176
    %v584 = vunpack.c.l.b16 %v177
    %v585 = vunpack.c.h.b16 %v177
    %v586 = vunpack.c.l.b16 %v178
    %v587 = vunpack.c.h.b16 %v178
    %v588 = vunpack.c.l.b16 %v179
    %v589 = vunpack.c.h.b16 %v179
    %v590 = vunpack.c.l.b16 %v180
    %v591 = vunpack.c.h.b16 %v180
    %v592 = vunpack.c.l.b16 %v181
    %v593 = vunpack.c.h.b16 %v181
    %v594 = vunpack.c.l.b16 %v182
    %v595 = vunpack.c.h.b16 %v182
    %v596 = vunpack.c.l.b16 %v183
    %v597 = vunpack.c.h.b16 %v183
    %v598 = vunpack.c.l.b16 %v184
    %v599 = vunpack.c.h.b16 %v184
    %v600 = vunpack.c.l.b16 %v185
    %v601 = vunpack.c.h.b16 %v185
    %v602 = vunpack.c.l.b16 %v186
    %v603 = vunpack.c.h.b16 %v186
    %v604 = vunpack.c.l.b16 %v187
    %v605 = vunpack.c.h.b16 %v187
    %v606 = vunpack.c.l.b16 %v188
    %v607 = vunpack.c.h.b16 %v188
    %v608 = vunpack.c.l.b16 %v189
    %v609 = vunpack.c.h.b16 %v189
    %v610 = vunpack.c.l.b16 %v190
    %v611 = vunpack.c.h.b16 %v190
    %v612 = vunpack.c.l.b16 %v191
    %v613 = vunpack.c.h.b16 %v191
    %v614 = vunpack.c.l.b16 %v192
    %v615 = vunpack.c.h.b16 %v192
    %v616 = vunpack.c.l.b16 %v193
    %v617 = vunpack.c.h.b16 %v193
    %v618 = vunpack.c.l.b16 %v194
    %v619 = vunpack.c.h.b16 %v194
    %v620 = vunpack.c.l.b16 %v195
    %v621 = vunpack.c.h.b16 %v195
    %v622 = vpack.c.b16 %v370, %v366
    %v623 = vpack.c.b16 %v371, %v367
    %v624 = vpack.c.b16 %v372, %v368
    %v625 = vpack.c.b16 %v373, %v369
    %v626 = vpack.c.b16 %v378, %v374
    %v627 = vpack.c.b16 %v379, %v375
    %v628 = vpack.c.b16 %v380, %v376
    %v629 = vpack.c.b16 %v381, %v377
    %v630 = vpack.c.b16 %v386, %v382
    %v631 = vpack.c.b16 %v387, %v383
    %v632 = vpack.c.b16 %v388, %v384
    %v633 = vpack.c.b16 %v389, %v385
    %v634 = vpack.c.b16 %v394, %v390
    %v635 = vpack.c.b16 %v395, %v391
    %v636 = vpack.c.b16 %v396, %v392
    %v637 = vpack.c.b16 %v397, %v393
    %v638 = vpack.c.b16 %v402, %v398
    %v639 = vpack.c.b16 %v403, %v399
    %v640 = vpack.c.b16 %v404, %v400
    %v641 = vpack.c.b16 %v405, %v401
    %v642 = vpack.c.b16 %v410, %v406
    %v643 = vpack.c.b16 %v411, %v407
    %v644 = vpack.c.b16 %v412, %v408
    %v645 = vpack.c.b16 %v413, %v409
    %v646 = vpack.c.b16 %v418, %v414
    %v647 = vpack.c.b16 %v419, %v415
    %v648 = vpack.c.b16 %v420, %v416
    %v649 = vpack.c.b16 %v421, %v417
    %v650 = vpack.c.b16 %v426, %v422
    %v651 = vpack.c.b16 %v427, %v423
    %v652 = vpack.c.b16 %v428, %v424
    %v653 = vpack.c.b16 %v429, %v425
    %v654 = vpack.c.b16 %v434, %v430
    %v655 = vpack.c.b16 %v435, %v431
    %v656 = vpack.c.b16 %v436, %v432
    %v657 = vpack.c.b16 %v437, %v433
    %v658 = vpack.c.b16 %v442, %v438
    %v659 = vpack.c.b16 %v443, %v439
    %v660 = vpack.c.b16 %v444, %v440
    %v661 = vpack.c.b16 %v445, %v441
    %v662 = vpack.c.b16 %v450, %v446
    %v663 = vpack.c.b16 %v451, %v447
    %v664 = vpack.c.b16 %v452, %v448
    %v665 = vpack.c.b16 %v453, %v449
    %v666 = vpack.c.b16 %v458, %v454
    %v667 = vpack.c.b16 %v459, %v455
    %v668 = vpack.c.b16 %v460, %v456
    %v669 = vpack.c.b16 %v461, %v457
    %v670 = vpack.c.b16 %v466, %v462
    %v671 = vpack.c.b16 %v467, %v463
    %v672 = vpack.c.b16 %v468, %v464
    %v673 = vpack.c.b16 %v469, %v465
    %v674 = vpack.c.b16 %v474, %v470
    %v675 = vpack.c.b16 %v475, %v471
    %v676 = vpack.c.b16 %v476, %v472
    %v677 = vpack.c.b16 %v477, %v473
    %v678 = vpack.c.b16 %v482, %v478
    %v679 = vpack.c.b16 %v483, %v479
    %v680 = vpack.c.b16 %v484, %v480
    %v681 = vpack.c.b16 %v485, %v481
    %v682 = vpack.c.b16 %v490, %v486
    %v683 = vpack.c.b16 %v491, %v487
    %v684 = vpack.c.b16 %v492, %v488
    %v685 = vpack.c.b16 %v493, %v489
    %v686 = vpack.c.b16 %v498, %v494
    %v687 = vpack.c.b16 %v499, %v495
    %v688 = vpack.c.b16 %v500, %v496
    %v689 = vpack.c.b16 %v501, %v497
    %v690 = vpack.c.b16 %v506, %v502
    %v691 = vpack.c.b16 %v507, %v503
    %v692 = vpack.c.b16 %v508, %v504
    %v693 = vpack.c.b16 %v509, %v505
    %v694 = vpack.c.b16 %v514, %v510
    %v695 = vpack.c.b16 %v515, %v511
    %v696 = vpack.c.b16 %v516, %v512
    %v697 = vpack.c.b16 %v517, %v513
    %v698 = vpack.c.b16 %v522, %v518
    %v699 = vpack.c.b16 %v523, %v519
    %v700 = vpack.c.b16 %v524, %v520
    %v701 = vpack.c.b16 %v525, %v521
    %v702 = vpack.c.b16 %v530, %v526
    %v703 = vpack.c.b16 %v531, %v527
    %v704 = vpack.c.b16 %v532, %v528
    %v705 = vpack.c.b16 %v533, %v529
    %v706 = vpack.c.b16 %v538, %v534
    %v707 = vpack.c.b16 %v539, %v535
    %v708 = vpack.c.b16 %v540, %v536
    %v709 = vpack.c.b16 %v541, %v537
    %v710 = vpack.c.b16 %v546, %v542
    %v711 = vpack.c.b16 %v547, %v543
    %v712 = vpack.c.b16 %v548, %v544
    %v713 = vpack.c.b16 %v549, %v545
    %v714 = vpack.c.b16 %v554, %v550
    %v715 = vpack.c.b16 %v555, %v551
    %v716 = vpack.c.b16 %v556, %v552
    %v717 = vpack.c.b16 %v557, %v553
    %v718 = vpack.c.b16 %v562, %v558
    %v719 = vpack.c.b16 %v563, %v559
    %v720 = vpack.c.b16 %v564, %v560
    %v721 = vpack.c.b16 %v565, %v561
    %v722 = vpack.c.b16 %v570, %v566
    %v723 = vpack.c.b16 %v571, %v567
    %v724 = vpack.c.b16 %v572, %v568
    %v725 = vpack.c.b16 %v573, %v569
    %v726 = vpack.c.b16 %v578, %v574
    %v727 = vpack.c.b16 %v579, %v575
    %v728 = vpack.c.b16 %v580, %v576
    %v729 = vpack.c.b16 %v581, %v577
    %v730 = vpack.c.b16 %v586, %v582
    %v731 = vpack.c.b16 %v587, %v583
    %v732 = vpack.c.b16 %v588, %v584
    %v733 = vpack.c.b16 %v589, %v585
    %v734 = vpack.c.b16 %v594, %v590
    %v735 = vpack.c.b16 %v595, %v591
    %v736 = vpack.c.b16 %v596, %v592
    %v737 = vpack.c.b16 %v597, %v593
    %v738 = vpack.c.b16 %v602, %v598
    %v739 = vpack.c.b16 %v603, %v599
    %v740 = vpack.c.b16 %v604, %v600
    %v741 = vpack.c.b16 %v605, %v601
    %v742 = vpack.c.b16 %v610, %v606
    %v743 = vpack.c.b16 %v611, %v607
    %v744 = vpack.c.b16 %v612, %v608
    %v745 = vpack.c.b16 %v613, %v609
    %v746 = vpack.c.b16 %v618, %v614
    %v747 = vpack.c.b16 %v619, %v615
    %v748 = vpack.c.b16 %v620, %v616
    %v749 = vpack.c.b16 %v621, %v617
    %878 = vmatprep.subr.bf16.mxu0 %v651
    %879 = vmatpush1.bf16.msra.mxu0 %v650
    %880 = vmatprep.subr.bf16.mxu0 %v647
    %881 = vmatpush1.bf16.msra.mxu0 %v646
    %882 = vmatprep.subr.bf16.mxu0 %v643
    %883 = vmatpush1.bf16.msra.mxu0 %v642
    %884 = vmatprep.subr.bf16.mxu0 %v639
    %885 = vmatpush1.bf16.msra.mxu0 %v638
    %886 = vmatprep.subr.bf16.mxu0 %v635
    %887 = vmatpush1.bf16.msra.mxu0 %v634
    %888 = vmatprep.subr.bf16.mxu0 %v631
    %889 = vmatpush1.bf16.msra.mxu0 %v630
    %890 = vmatprep.subr.bf16.mxu0 %v627
    %891 = vmatpush1.bf16.msra.mxu0 %v626
    %892 = vmatprep.subr.bf16.mxu0 %v623
    %893 = vmatpush1.bf16.msra.mxu0 %v622
    %894 = vmatprep.subr.bf16.mxu0 %v683
    %895 = vmatpush2.bf16.msra.mxu0 %v682
    %896 = vmatprep.subr.bf16.mxu0 %v679
    %897 = vmatpush2.bf16.msra.mxu0 %v678
    %898 = vmatprep.subr.bf16.mxu0 %v675
    %899 = vmatpush2.bf16.msra.mxu0 %v674
    %900 = vmatprep.subr.bf16.mxu0 %v671
    %901 = vmatpush2.bf16.msra.mxu0 %v670
    %902 = vmatprep.subr.bf16.mxu0 %v667
    %903 = vmatpush2.bf16.msra.mxu0 %v666
    %904 = vmatprep.subr.bf16.mxu0 %v663
    %905 = vmatpush2.bf16.msra.mxu0 %v662
    %906 = vmatprep.subr.bf16.mxu0 %v659
    %907 = vmatpush2.bf16.msra.mxu0 %v658
    %908 = vmatprep.subr.bf16.mxu0 %v655
    %909 = vmatpush2.bf16.msra.mxu0 %v654
    %910 = vmatprep.mubr.bf16.mxu0 %v231
    %911 = vmatmul.mubr.bf16.gmra.mxu0 %v230
    %v912 = vpop.f32.mrf.mxu0
    %v913 = vadd.f32 %v201, %v912
    %v914 = vpop.f32.mrf.mxu0
    %v915 = vadd.f32 %v205, %v914
    %v916 = vpop.f32.mrf.mxu0
    %v917 = vadd.f32 %v201, %v916
    %v918 = vpop.f32.mrf.mxu0
    %v919 = vadd.f32 %v205, %v918
    %920 = vdwg.mxu0
    %921 = vmatprep.subr.bf16.mxu0 %v715
    %922 = vmatpush1.bf16.msra.mxu0 %v714
    %923 = vmatprep.subr.bf16.mxu0 %v711
    %924 = vmatpush1.bf16.msra.mxu0 %v710
    %925 = vmatprep.subr.bf16.mxu0 %v707
    %926 = vmatpush1.bf16.msra.mxu0 %v706
    %927 = vmatprep.subr.bf16.mxu0 %v703
    %928 = vmatpush1.bf16.msra.mxu0 %v702
    %929 = vmatprep.subr.bf16.mxu0 %v699
    %930 = vmatpush1.bf16.msra.mxu0 %v698
    %931 = vmatprep.subr.bf16.mxu0 %v695
    %932 = vmatpush1.bf16.msra.mxu0 %v694
    %933 = vmatprep.subr.bf16.mxu0 %v691
    %934 = vmatpush1.bf16.msra.mxu0 %v690
    %935 = vmatprep.subr.bf16.mxu0 %v687
    %936 = vmatpush1.bf16.msra.mxu0 %v686
    %937 = vmatprep.subr.bf16.mxu0 %v747
    %938 = vmatpush2.bf16.msra.mxu0 %v746
    %939 = vmatprep.subr.bf16.mxu0 %v743
    %940 = vmatpush2.bf16.msra.mxu0 %v742
    %941 = vmatprep.subr.bf16.mxu0 %v739
    %942 = vmatpush2.bf16.msra.mxu0 %v738
    %943 = vmatprep.subr.bf16.mxu0 %v735
    %944 = vmatpush2.bf16.msra.mxu0 %v734
    %945 = vmatprep.subr.bf16.mxu0 %v731
    %946 = vmatpush2.bf16.msra.mxu0 %v730
    %947 = vmatprep.subr.bf16.mxu0 %v727
    %948 = vmatpush2.bf16.msra.mxu0 %v726
    %949 = vmatprep.subr.bf16.mxu0 %v723
    %950 = vmatpush2.bf16.msra.mxu0 %v722
    %951 = vmatprep.subr.bf16.mxu0 %v719
    %952 = vmatpush2.bf16.msra.mxu0 %v718
    %953 = vmatprep.mubr.bf16.mxu0 %v233
    %954 = vmatmul.mubr.bf16.gmra.mxu0 %v232
    %v955 = vpop.f32.mrf.mxu0
    %v956 = vadd.f32 %v913, %v955
    %v957 = vpop.f32.mrf.mxu0
    %v958 = vadd.f32 %v915, %v957
    %v959 = vpop.f32.mrf.mxu0
    %v960 = vadd.f32 %v917, %v959
    %v961 = vpop.f32.mrf.mxu0
    %v962 = vadd.f32 %v919, %v961
    %963 = vdwg.mxu0
    %964 = vmatprep.subr.bf16.mxu0 %v653
    %965 = vmatpush1.bf16.msra.mxu0 %v652
    %966 = vmatprep.subr.bf16.mxu0 %v649
    %967 = vmatpush1.bf16.msra.mxu0 %v648
    %968 = vmatprep.subr.bf16.mxu0 %v645
    %969 = vmatpush1.bf16.msra.mxu0 %v644
    %970 = vmatprep.subr.bf16.mxu0 %v641
    %971 = vmatpush1.bf16.msra.mxu0 %v640
    %972 = vmatprep.subr.bf16.mxu0 %v637
    %973 = vmatpush1.bf16.msra.mxu0 %v636
    %974 = vmatprep.subr.bf16.mxu0 %v633
    %975 = vmatpush1.bf16.msra.mxu0 %v632
    %976 = vmatprep.subr.bf16.mxu0 %v629
    %977 = vmatpush1.bf16.msra.mxu0 %v628
    %978 = vmatprep.subr.bf16.mxu0 %v625
    %979 = vmatpush1.bf16.msra.mxu0 %v624
    %980 = vmatprep.subr.bf16.mxu0 %v685
    %981 = vmatpush2.bf16.msra.mxu0 %v684
    %982 = vmatprep.subr.bf16.mxu0 %v681
    %983 = vmatpush2.bf16.msra.mxu0 %v680
    %984 = vmatprep.subr.bf16.mxu0 %v677
    %985 = vmatpush2.bf16.msra.mxu0 %v676
    %986 = vmatprep.subr.bf16.mxu0 %v673
    %987 = vmatpush2.bf16.msra.mxu0 %v672
    %988 = vmatprep.subr.bf16.mxu0 %v669
    %989 = vmatpush2.bf16.msra.mxu0 %v668
    %990 = vmatprep.subr.bf16.mxu0 %v665
    %991 = vmatpush2.bf16.msra.mxu0 %v664
    %992 = vmatprep.subr.bf16.mxu0 %v661
    %993 = vmatpush2.bf16.msra.mxu0 %v660
    %994 = vmatprep.subr.bf16.mxu0 %v657
    %995 = vmatpush2.bf16.msra.mxu0 %v656
    %996 = vmatprep.mubr.bf16.mxu0 %v231
    %997 = vmatmul.mubr.bf16.gmra.mxu0 %v230
    %v998 = vpop.f32.mrf.mxu0
    %v999 = vadd.f32 %v209, %v998
    %v1000 = vpop.f32.mrf.mxu0
    %v1001 = vadd.f32 %v213, %v1000
    %v1002 = vpop.f32.mrf.mxu0
    %v1003 = vadd.f32 %v209, %v1002
    %v1004 = vpop.f32.mrf.mxu0
    %v1005 = vadd.f32 %v213, %v1004
    %1006 = vdwg.mxu0
    %1007 = vmatprep.subr.bf16.mxu0 %v717
    %1008 = vmatpush1.bf16.msra.mxu0 %v716
    %1009 = vmatprep.subr.bf16.mxu0 %v713
    %1010 = vmatpush1.bf16.msra.mxu0 %v712
    %1011 = vmatprep.subr.bf16.mxu0 %v709
    %1012 = vmatpush1.bf16.msra.mxu0 %v708
    %1013 = vmatprep.subr.bf16.mxu0 %v705
    %1014 = vmatpush1.bf16.msra.mxu0 %v704
    %1015 = vmatprep.subr.bf16.mxu0 %v701
    %1016 = vmatpush1.bf16.msra.mxu0 %v700
    %1017 = vmatprep.subr.bf16.mxu0 %v697
    %1018 = vmatpush1.bf16.msra.mxu0 %v696
    %1019 = vmatprep.subr.bf16.mxu0 %v693
    %1020 = vmatpush1.bf16.msra.mxu0 %v692
    %1021 = vmatprep.subr.bf16.mxu0 %v689
    %1022 = vmatpush1.bf16.msra.mxu0 %v688
    %1023 = vmatprep.subr.bf16.mxu0 %v749
    %1024 = vmatpush2.bf16.msra.mxu0 %v748
    %1025 = vmatprep.subr.bf16.mxu0 %v745
    %1026 = vmatpush2.bf16.msra.mxu0 %v744
    %1027 = vmatprep.subr.bf16.mxu0 %v741
    %1028 = vmatpush2.bf16.msra.mxu0 %v740
    %1029 = vmatprep.subr.bf16.mxu0 %v737
    %1030 = vmatpush2.bf16.msra.mxu0 %v736
    %1031 = vmatprep.subr.bf16.mxu0 %v733
    %1032 = vmatpush2.bf16.msra.mxu0 %v732
    %1033 = vmatprep.subr.bf16.mxu0 %v729
    %1034 = vmatpush2.bf16.msra.mxu0 %v728
    %1035 = vmatprep.subr.bf16.mxu0 %v725
    %1036 = vmatpush2.bf16.msra.mxu0 %v724
    %1037 = vmatprep.subr.bf16.mxu0 %v721
    %1038 = vmatpush2.bf16.msra.mxu0 %v720
    %1039 = vmatprep.mubr.bf16.mxu0 %v233
    %1040 = vmatmul.mubr.bf16.gmra.mxu0 %v232
    %v1041 = vpop.f32.mrf.mxu0
    %v1042 = vadd.f32 %v999, %v1041
    %v1043 = vpop.f32.mrf.mxu0
    %v1044 = vadd.f32 %v1001, %v1043
    %v1045 = vpop.f32.mrf.mxu0
    %v1046 = vadd.f32 %v1003, %v1045
    %v1047 = vpop.f32.mrf.mxu0
    %v1048 = vadd.f32 %v1005, %v1047
    %1049 = vdwg.mxu0
    %s1050 = sld [smem:[#allocation2]]
    %vm1051 = vcmp.ge.f32.partialorder %v956, 0.0
    %vm1052 = vcmp.ge.f32.partialorder %v958, 0.0
    %vm1053 = vcmp.ge.f32.partialorder %v1042, 0.0
    %vm1054 = vcmp.ge.f32.partialorder %v1044, 0.0
    %vm1055 = vcmp.ge.f32.partialorder %v960, 0.0
    %vm1056 = vcmp.ge.f32.partialorder %v962, 0.0
    %vm1057 = vcmp.ge.f32.partialorder %v1046, 0.0
    %vm1058 = vcmp.ge.f32.partialorder %v1048, 0.0
    %v1059 = vstv %s1050
    %v1060 = vmul.f32 %v1059, %v956
    %v1061 = vmul.f32 %v1059, %v958
    %v1062 = vmul.f32 %v1059, %v1042
    %v1063 = vmul.f32 %v1059, %v1044
    %v1064 = vmul.f32 %v1059, %v960
    %v1065 = vmul.f32 %v1059, %v962
    %v1066 = vmul.f32 %v1059, %v1046
    %v1067 = vmul.f32 %v1059, %v1048
    %v1068 = vsel %vm1051, %v956, %v1060
    %v1069 = vsel %vm1052, %v958, %v1061
    %v1070 = vsel %vm1053, %v1042, %v1062
    %v1071 = vsel %vm1054, %v1044, %v1063
    %v1072 = vsel %vm1055, %v960, %v1064
    %v1073 = vsel %vm1056, %v962, %v1065
    %v1074 = vsel %vm1057, %v1046, %v1066
    %v1075 = vsel %vm1058, %v1048, %v1067
    %v1076 = vadd.f32 %v1068, %v1069
    %v1077 = vadd.f32 %v1076, %v1070
    %v1078 = vadd.f32 %v1077, %v1071
    %1079 = vadd.xlane.f32.xlu0 %v1078
    %v1080 = vpop.xlane.xlu0 %1079
    %v1081 = vadd.f32 %v1072, %v1073
    %v1082 = vadd.f32 %v1081, %v1074
    %v1083 = vadd.f32 %v1082, %v1075
    %1084 = vadd.xlane.f32.xlu0 %v1083
    %v1085 = vpop.xlane.xlu0 %1084
    %v1086 = vmul.f32 %v1080, 0.001953125
    %v1087 = vmul.f32 %v1085, 0.001953125
    %v1088 = vmul.f32 %v1068, %v1068
    %v1089 = vmul.f32 %v1069, %v1069
    %v1090 = vmul.f32 %v1070, %v1070
    %v1091 = vmul.f32 %v1071, %v1071
    %v1092 = vmul.f32 %v1072, %v1072
    %v1093 = vmul.f32 %v1073, %v1073
    %v1094 = vmul.f32 %v1074, %v1074
    %v1095 = vmul.f32 %v1075, %v1075
    %v1096 = vadd.f32 %v1088, %v1089
    %v1097 = vadd.f32 %v1096, %v1090
    %v1098 = vadd.f32 %v1097, %v1091
    %1099 = vadd.xlane.f32.xlu0 %v1098
    %v1100 = vpop.xlane.xlu0 %1099
    %v1101 = vadd.f32 %v1092, %v1093
    %v1102 = vadd.f32 %v1101, %v1094
    %v1103 = vadd.f32 %v1102, %v1095
    %1104 = vadd.xlane.f32.xlu0 %v1103
    %v1105 = vpop.xlane.xlu0 %1104
    %v1106 = vmul.f32 %v1100, 0.001953125
    %v1107 = vmul.f32 %v1105, 0.001953125
    %v1108 = vmul.f32 %v1086, %v1086
    %v1109 = vmul.f32 %v1087, %v1087
    %v1110 = vsub.f32 %v1106, %v1108
    %v1111 = vsub.f32 %v1107, %v1109
    %v1112 = vmax.f32 %v1110, 0.0
    %v1113 = vmax.f32 %v1111, 0.0
    %v1114 = vld [vmem:[#allocation8] sm:$0xf]
    %v1115 = vadd.f32 %v1112, 1e-05
    %v1116 = vadd.f32 %v1113, 1e-05
    %v1117 = vrsqrt.pop %v1115
    %v1118 = vrsqrt.pop %v1116
    %v1120 = vlaneseq
    %v1121 = vshrl.u32 %v1120, 7
    %v1122 = vsub.s32 0, %v1121
    %v1123 = vrot.slane %v1114, %v1122
    %v1124 = vlaneseq
    %v1125 = vshrl.u32 %v1124, 7
    %v1126 = vsub.s32 1, %v1125
    %v1127 = vrot.slane %v1114, %v1126
    %v1128 = vlaneseq
    %v1129 = vshrl.u32 %v1128, 7
    %v1130 = vsub.s32 2, %v1129
    %v1131 = vrot.slane %v1114, %v1130
    %v1132 = vlaneseq
    %v1133 = vshrl.u32 %v1132, 7
    %v1134 = vsub.s32 3, %v1133
    %v1135 = vrot.slane %v1114, %v1134
    %v1140 = vmul.f32 %v1123, %v1117
    %v1141 = vmul.f32 %v1127, %v1117
    %v1142 = vmul.f32 %v1131, %v1117
    %v1143 = vmul.f32 %v1135, %v1117
    %v1144 = vmul.f32 %v1123, %v1118
    %v1145 = vmul.f32 %v1127, %v1118
    %v1146 = vmul.f32 %v1131, %v1118
    %v1147 = vmul.f32 %v1135, %v1118
    %v1148 = vsub.f32 %v1068, %v1086
    %v1149 = vsub.f32 %v1069, %v1086
    %v1150 = vsub.f32 %v1070, %v1086
    %v1151 = vsub.f32 %v1071, %v1086
    %v1152 = vsub.f32 %v1072, %v1087
    %v1153 = vsub.f32 %v1073, %v1087
    %v1154 = vsub.f32 %v1074, %v1087
    %v1155 = vsub.f32 %v1075, %v1087
    %v1156 = vmul.f32 %v1148, %v1140
    %v1157 = vmul.f32 %v1149, %v1141
    %v1158 = vmul.f32 %v1150, %v1142
    %v1159 = vmul.f32 %v1151, %v1143
    %v1160 = vmul.f32 %v1152, %v1144
    %v1161 = vmul.f32 %v1153, %v1145
    %v1162 = vmul.f32 %v1154, %v1146
    %v1163 = vmul.f32 %v1155, %v1147
    %v1164 = vld [vmem:[%s5] sm:$0xf]
    %v1166 = vlaneseq
    %v1167 = vshrl.u32 %v1166, 7
    %v1168 = vsub.s32 0, %v1167
    %v1169 = vrot.slane %v1164, %v1168
    %v1170 = vlaneseq
    %v1171 = vshrl.u32 %v1170, 7
    %v1172 = vsub.s32 1, %v1171
    %v1173 = vrot.slane %v1164, %v1172
    %v1174 = vlaneseq
    %v1175 = vshrl.u32 %v1174, 7
    %v1176 = vsub.s32 2, %v1175
    %v1177 = vrot.slane %v1164, %v1176
    %v1178 = vlaneseq
    %v1179 = vshrl.u32 %v1178, 7
    %v1180 = vsub.s32 3, %v1179
    %v1181 = vrot.slane %v1164, %v1180
    %v1186 = vadd.f32 %v1156, %v1169
    %v1187 = vadd.f32 %v1157, %v1173
    %v1188 = vadd.f32 %v1158, %v1177
    %v1189 = vadd.f32 %v1159, %v1181
    %v1190 = vadd.f32 %v1160, %v1169
    %v1191 = vadd.f32 %v1161, %v1173
    %v1192 = vadd.f32 %v1162, %v1177
    %v1193 = vadd.f32 %v1163, %v1181
    %1194 = vst [vmem:[#allocation9] sm:$0xff] %v1186
    %1195 = vst [vmem:[#allocation9 + $0x8] sm:$0xff] %v1187
    %1196 = vst [vmem:[#allocation9 + $0x10] sm:$0xff] %v1188
    %1197 = vst [vmem:[#allocation9 + $0x18] sm:$0xff] %v1189
    %1198 = vst [vmem:[#allocation9 + $0x20] sm:$0xff] %v1190
    %1199 = vst [vmem:[#allocation9 + $0x28] sm:$0xff] %v1191
    %1200 = vst [vmem:[#allocation9 + $0x30] sm:$0xff] %v1192
    %1201 = vst [vmem:[#allocation9 + $0x38] sm:$0xff] %v1193
    // Predicated region
    $region38: #{tpu_custom_call.1} parent=1 // pred_check
      _
    $region39: #{tpu_custom_call.1} parent=1 // pred_check_branch
      %1203 = sbr.rel (0) target = $region41
    $region40: #{tpu_custom_call.1} parent=1 // pred_region
      %s1205 = ssub.s32 1024, 1024
      %1206 = vsyncadd [#allocation5], %s1205
      %s1207 = sshll.u32 [#allocation9], 4
      %s1208 = int_to_ptr.vmem [resolvable:$true] %s1207
      %1213 = dma.vmem_to_hbm [thread:$0]  %s1208, 1024, %s6, [#allocation5], 512, 512, 32
    $region41: #{tpu_custom_call.1} parent=1 // pred_fallthru
      _
    // Predicated region
    $region42: #{tpu_custom_call.1} parent=1 // pred_check
      _
    $region43: #{tpu_custom_call.1} parent=1 // pred_check_branch
      %1215 = sbr.rel (0) target = $region45
    $region44: #{tpu_custom_call.1} parent=1 // pred_region
      %1216 = dma.done [#allocation5], 1024
    $region45: #{tpu_custom_call.1} parent=1 // pred_fallthru
      _
    %1217 = vsyncpa [#allocation4], 1
    %1218 = vsyncpa [#allocation7], 1
    %1219 = vsyncpa [#allocation5], 1

</llo_original>
